<compile_context>
chip_gen: v5e
topology: v5e:2x2
jax: 0.10.0
libtpu: 0.0.40
codegen_flags: <defaults>
</compile_context>

<pallas_src>
import functools
import math

import jax
import jax.numpy as jnp
from jax.experimental import pallas as pl
from jax.experimental.pallas import tpu as pltpu


def _dyt_kernel(alpha_ref, scale_ref, shift_ref, x_ref, o_ref, *, period):
    # alpha_ref: (1,) f32 in SMEM.
    # scale_ref / shift_ref: resident (period, lane) or (1, lane) f32 VMEM blocks.
    # x_ref / o_ref: (tile_rows, lane) VMEM tiles.
    xv = x_ref[...].astype(jnp.float32)          # promote once; compute is free here
    t = jnp.tanh(alpha_ref[0] * xv)              # EUP transcendental, own VLIW slot
    s = scale_ref[...]
    b = shift_ref[...]
    if period > 1:                               # static (trace-time) branch
        reps = x_ref.shape[0] // period
        s = jnp.tile(s, (reps, 1))
        b = jnp.tile(b, (reps, 1))
    o_ref[...] = (s * t + b).astype(o_ref.dtype)


def dyt(x, scale, shift, alpha, *, target_tile_bytes=None):
    """Pallas implementation of DyT.forward.

    x:     (..., emb_dim)
    scale: (emb_dim,)
    shift: (emb_dim,)
    alpha: scalar
    """
    orig_shape = x.shape
    emb_dim = orig_shape[-1]
    dtype = x.dtype
    itemsize = jnp.dtype(dtype).itemsize
    # sublane granularity: 8 rows for 4-byte dtypes, 16 for 2-byte (bf16), ...
    sublane = 8 * max(1, 4 // itemsize)

    scale_f = scale.astype(jnp.float32)
    shift_f = shift.astype(jnp.float32)

    x2 = x.reshape(-1, emb_dim)
    rows_in = x2.shape[0]
    total = rows_in * emb_dim

    # ---- choose a lane-dense layout (no pads, no trailing slices) ----------
    if emb_dim % 128 == 0:
        lane, period = emb_dim, 1
        xk = x2
        scale_blk = scale_f.reshape(1, lane)
        shift_blk = shift_f.reshape(1, lane)
    elif total % 128 == 0:
        # General fold: view the flat data as (-1, 128).  The scale/shift pattern
        # repeats every L lane-rows, L = lcm(emb_dim, 128) / 128.
        g = math.gcd(emb_dim, 128)
        period = emb_dim // g                    # L
        reps_per_period = 128 // g               # emb_dim rows per period
        lane = 128
        xk = x2.reshape(-1, lane)                # contiguous, order-preserving
        scale_blk = jnp.tile(scale_f, reps_per_period).reshape(period, lane)
        shift_blk = jnp.tile(shift_f, reps_per_period).reshape(period, lane)
    else:
        # Awkward total: keep full last dim as block's last dim (always legal).
        lane, period = emb_dim, 1
        xk = x2
        scale_blk = scale_f.reshape(1, lane)
        shift_blk = shift_f.reshape(1, lane)

    rows = xk.shape[0]

    # ---- tile sizing --------------------------------------------------------
    if target_tile_bytes is None:
        target_tile_bytes = 4 * 1024 * 1024
        try:
            info = pltpu.get_tpu_info()
            # 64 MiB VMEM per core => v7x-class part: 3.2 TB/s HBM makes bigger
            # tiles worthwhile (amortize ~0.35us per-step overhead); 8 MiB tiles
            # double-buffered (32 MiB) still fit comfortably.
            if info.vmem_capacity_bytes <= 64 * 1024 * 1024:
                target_tile_bytes = 8 * 1024 * 1024
        except Exception:
            pass  # unknown generation: keep the conservative 4 MiB default

    # tile_rows must be a multiple of both the sublane granularity and the
    # scale/shift period so every block starts at a period boundary.
    q = (sublane * period) // math.gcd(sublane, period)
    tile_rows = (target_tile_bytes // (lane * itemsize)) // q * q
    tile_rows = max(q, tile_rows)

    # Keep >= ~8 grid steps when data is big enough: restores DMA/compute overlap
    # and gives both v7x TensorCores grid work to shard.
    total_bytes = rows * lane * itemsize
    if total_bytes > 2 * 1024 * 1024:
        cap = (rows // 8) // q * q
        if cap >= q:
            tile_rows = min(tile_rows, cap)

    # Small-array handling: never let the block exceed the array's row extent.
    if tile_rows >= rows:
        tile_rows = rows if rows <= q else (rows // q) * q

    grid = (pl.cdiv(rows, tile_rows),)   # ragged final block handled by Pallas

    alpha_arr = jnp.asarray(alpha, jnp.float32).reshape(1)

    out = pl.pallas_call(
        functools.partial(_dyt_kernel, period=period),
        out_shape=jax.ShapeDtypeStruct((rows, lane), dtype),
        grid=grid,
        in_specs=[
            pl.BlockSpec(memory_space=pltpu.MemorySpace.SMEM),        # alpha scalar
            pl.BlockSpec(scale_blk.shape, lambda i: (0, 0)),          # scale (resident)
            pl.BlockSpec(shift_blk.shape, lambda i: (0, 0)),          # shift (resident)
            pl.BlockSpec((tile_rows, lane), lambda i: (i, 0)),        # x tile
        ],
        out_specs=pl.BlockSpec((tile_rows, lane), lambda i: (i, 0)),
        compiler_params=pltpu.CompilerParams(
            dimension_semantics=("parallel",),
            vmem_limit_bytes=48 * 1024 * 1024,
        ),
    )(alpha_arr, scale_blk, shift_blk, xk)

    # Contiguous reshape back; no slicing needed (out already has exactly
    # rows*lane == prod(orig_shape) elements).
    return out.reshape(orig_shape)


if __name__ == "__main__":
    # Shapes implied by the module: x = (batch, seq, emb_dim)
    batch, seq, emb_dim = 2, 8, 32
    key = jax.random.PRNGKey(0)
    x = jax.random.normal(key, (batch, seq, emb_dim), dtype=jnp.float32)

    # Deterministic parameter init matching DyT.__init__:
    scale = jnp.ones((emb_dim,), dtype=jnp.float32)    # nn.Parameter(torch.ones(emb_dim))
    shift = jnp.zeros((emb_dim,), dtype=jnp.float32)   # nn.Parameter(torch.zeros(emb_dim))
    alpha = jnp.float32(1.0)                           # nn.Parameter(torch.tensor(alpha))

    out = jax.block_until_ready(dyt(x, scale, shift, alpha))
    ref = scale * jnp.tanh(alpha * x) + shift
    assert out.shape == x.shape and out.dtype == x.dtype
    assert jnp.allclose(out, ref, atol=1e-5, rtol=1e-5)

    # Odd, non-divisible shape: exercises the ragged-final-block path
    # (no pads, no trailing slice, fallback lane = emb_dim layout).
    x2 = jax.random.normal(jax.random.PRNGKey(1), (3, 257, emb_dim), dtype=jnp.float32)
    out2 = jax.block_until_ready(dyt(x2, scale, shift, alpha))
    ref2 = scale * jnp.tanh(alpha * x2) + shift
    assert jnp.allclose(out2, ref2, atol=1e-5, rtol=1e-5)

    print("KERNEL_OK")
</pallas_src>

<mosaic_0001>
module attributes {stable_mosaic.version = 11 : i64} {
  func.func @_dyt_kernel(%arg0: i32, %arg1: memref<1xf32, #tpu.memory_space<smem>>, %arg2: memref<1x128xf32, #tpu.memory_space<vmem>>, %arg3: memref<1x128xf32, #tpu.memory_space<vmem>>, %arg4: memref<4x128xf32, #tpu.memory_space<vmem>>, %arg5: memref<4x128xf32, #tpu.memory_space<vmem>>) attributes {dimension_semantics = [#tpu.dimension_semantics<parallel>], iteration_bounds = array<i64: 1>, scalar_prefetch = 0 : i64, scratch_operands = 0 : i64, tpu.core_type = #tpu.core_type<tc>, window_params = [{transform_indices = @transform_0, window_bounds = array<i64: 1>}, {pipeline_mode = #tpu.pipeline_mode<synchronous>, transform_indices = @transform_1, window_bounds = array<i64: 1, 128>}, {pipeline_mode = #tpu.pipeline_mode<synchronous>, transform_indices = @transform_2, window_bounds = array<i64: 1, 128>}, {transform_indices = @transform_3, window_bounds = array<i64: 4, 128>}, {transform_indices = @transform_4, window_bounds = array<i64: 4, 128>}]} {
    %c0 = arith.constant 0 : index
    %c0_0 = arith.constant 0 : index
    %0 = vector.load %arg4[%c0, %c0_0] : memref<4x128xf32, #tpu.memory_space<vmem>>, vector<4x128xf32>
    %c0_1 = arith.constant 0 : index
    %1 = memref.load %arg1[%c0_1] : memref<1xf32, #tpu.memory_space<smem>>
    %2 = vector.broadcast %1 : f32 to vector<4x128xf32>
    %3 = arith.mulf %2, %0 : vector<4x128xf32>
    %4 = math.tanh %3 : vector<4x128xf32>
    %c0_2 = arith.constant 0 : index
    %c0_3 = arith.constant 0 : index
    %5 = vector.load %arg2[%c0_2, %c0_3] : memref<1x128xf32, #tpu.memory_space<vmem>>, vector<1x128xf32>
    %c0_4 = arith.constant 0 : index
    %c0_5 = arith.constant 0 : index
    %6 = vector.load %arg3[%c0_4, %c0_5] : memref<1x128xf32, #tpu.memory_space<vmem>>, vector<1x128xf32>
    %7 = vector.broadcast %5 : vector<1x128xf32> to vector<4x128xf32>
    %8 = arith.mulf %7, %4 : vector<4x128xf32>
    %9 = vector.broadcast %6 : vector<1x128xf32> to vector<4x128xf32>
    %10 = arith.addf %8, %9 : vector<4x128xf32>
    %c0_6 = arith.constant 0 : index
    %c0_7 = arith.constant 0 : index
    %11 = vector.load %arg5[%c0_6, %c0_7] : memref<4x128xf32, #tpu.memory_space<vmem>>, vector<4x128xf32>
    tpu.vector_store %arg5[%c0_6, %c0_7], %10 {strides = array<i32>} : memref<4x128xf32, #tpu.memory_space<vmem>>, vector<4x128xf32>,
    return
  }
  func.func @transform_0(%arg0: i32) -> i32 {
    %c0_i32 = arith.constant 0 : i32
    %c0_i32_0 = arith.constant 0 : i32
    return %c0_i32 : i32
  }
  func.func @transform_1(%arg0: i32) -> (i32, i32) {
    %c0_i32 = arith.constant 0 : i32
    %c0_i32_0 = arith.constant 0 : i32
    %c0_i32_1 = arith.constant 0 : i32
    return %c0_i32, %c0_i32_0 : i32, i32
  }
  func.func @transform_2(%arg0: i32) -> (i32, i32) {
    %c0_i32 = arith.constant 0 : i32
    %c0_i32_0 = arith.constant 0 : i32
    %c0_i32_1 = arith.constant 0 : i32
    return %c0_i32, %c0_i32_0 : i32, i32
  }
  func.func @transform_3(%arg0: i32) -> (i32, i32) {
    %c0_i32 = arith.constant 0 : i32
    %c0_i32_0 = arith.constant 0 : i32
    return %arg0, %c0_i32 : i32, i32
  }
  func.func @transform_4(%arg0: i32) -> (i32, i32) {
    %c0_i32 = arith.constant 0 : i32
    %c0_i32_0 = arith.constant 0 : i32
    return %arg0, %c0_i32 : i32, i32
  }
}

</mosaic_0001>

<llo_original>
// kernel: tpu_custom_call.1
$region0: #{tpu_custom_call.1}
  #allocation0 [shape = 'u32[]', space=smem, size = 0x4, offset = 0x4, fixed_abs, tag = 'smem constant byte address 0x4 - core index']
  #allocation1 [shape = 'u32[72,128]{1,0:T(1,128)}', space=vmem, size = 0x9000, scoped, tag = 'internal scratch']
  #allocation2 [shape = 'f32[1]{0:T(128)S(6)}', space=smem, size = 0x200, scoped, tag = 'scoped memory for tpu_custom_call.1']
  %s0 = inlined_call_operand.<no memory space> [shape: f32[1], index: 0, kind: input, shape index: {}]
  %s1 = inlined_call_operand.vmem [shape: f32[1,128], index: 1, kind: input, shape index: {}]
  %s2 = inlined_call_operand.vmem [shape: f32[1,128], index: 2, kind: input, shape index: {}]
  %s3 = inlined_call_operand.hbm [shape: f32[4,128], index: 3, kind: input, shape index: {}]
  %s4 = inlined_call_operand.hbm [shape: f32[4,128], index: 4, kind: output, shape index: {}]
  %s5 = sld [smem:[#allocation0]]
  $region30: #{tpu_custom_call.1} parent=0
    _
  %s7 = ssub.s32 1, %s5
  %s8 = scalar_select 0, %s7, %s5
  %9 = sst [smem:[#allocation2]] %s0
  $region1: #{tpu_custom_call.1} parent=0
    #allocation3 [shape = 'u8[2048]{0}', space=vmem, size = 0x800, scoped, tag = 'input window, operand 3, single buffered']
    #allocation4 [shape = 's32[1]{0}', space=sflag, size = 0x4, scoped, tag = 'scoped memory for tpu_custom_call.1']
    #allocation5 [shape = 's32[1]{0}', space=sflag, size = 0x4, scoped, tag = 'scoped memory for tpu_custom_call.1']
    #allocation6 [shape = 'u8[2048]{0}', space=vmem, size = 0x800, scoped, tag = 'output window, operand 0, single buffered']
    %10 = vsyncpa [#allocation4], 0
    %11 = vsyncpa [#allocation5], 0
    // Predicated region
    $region2: #{tpu_custom_call.1} parent=1 // pred_check
      _
    $region3: #{tpu_custom_call.1} parent=1 // pred_check_branch
      %13 = sbr.rel (0) target = $region5
    $region4: #{tpu_custom_call.1} parent=1 // pred_region
      _
    $region5: #{tpu_custom_call.1} parent=1 // pred_fallthru
      _
    // Predicated region
    $region6: #{tpu_custom_call.1} parent=1 // pred_check
      _
    $region7: #{tpu_custom_call.1} parent=1 // pred_check_branch
      %15 = sbr.rel (0) target = $region9
    $region8: #{tpu_custom_call.1} parent=1 // pred_region
      _
    $region9: #{tpu_custom_call.1} parent=1 // pred_fallthru
      _
    // Predicated region
    $region10: #{tpu_custom_call.1} parent=1 // pred_check
      _
    $region11: #{tpu_custom_call.1} parent=1 // pred_check_branch
      %17 = sbr.rel (0) target = $region13
    $region12: #{tpu_custom_call.1} parent=1 // pred_region
      _
    $region13: #{tpu_custom_call.1} parent=1 // pred_fallthru
      _
    // Predicated region
    $region14: #{tpu_custom_call.1} parent=1 // pred_check
      _
    $region15: #{tpu_custom_call.1} parent=1 // pred_check_branch
      %19 = sbr.rel (0) target = $region17
    $region16: #{tpu_custom_call.1} parent=1 // pred_region
      %21 = vsyncadd [#allocation4], 0
      %s23 = sshll.u32 %s3, 4
      %s24 = int_to_ptr.hbm [resolvable:$true] %s23
      %s25 = sshll.u32 [#allocation3], 4
      %s26 = int_to_ptr.vmem [resolvable:$true] %s25
      %28 = dma.hbm_to_vmem [thread:$0]  %s24, 64, %s26, [#allocation4]
    $region17: #{tpu_custom_call.1} parent=1 // pred_fallthru
      _
    // Predicated region
    $region18: #{tpu_custom_call.1} parent=1 // pred_check
      _
    $region19: #{tpu_custom_call.1} parent=1 // pred_check_branch
      %30 = sbr.rel (0) target = $region21
    $region20: #{tpu_custom_call.1} parent=1 // pred_region
      %32 = dma.done [#allocation4], 64
    $region21: #{tpu_custom_call.1} parent=1 // pred_fallthru
      _
    %v33 = vld [vmem:[#allocation3] sm:$0xf]
    %s34 = sld [smem:[#allocation2]]
    %v35 = vstv %s34
    %v36 = vmul.f32 %v35, %v33
    %v37 = vtanh.pop %v36
    %v38 = vld [vmem:[%s1] sm:$0x1]
    %v39 = vld [vmem:[%s2] sm:$0x1]
    %v41 = vperm.slane %v38, 0
    %v43 = vmul.f32 %v41, %v37
    %v45 = vperm.slane %v39, 0
    %v47 = vadd.f32 %v43, %v45
    %48 = vst [vmem:[#allocation6] sm:$0xf] %v47
    // Predicated region
    $region22: #{tpu_custom_call.1} parent=1 // pred_check
      _
    $region23: #{tpu_custom_call.1} parent=1 // pred_check_branch
      %50 = sbr.rel (0) target = $region25
    $region24: #{tpu_custom_call.1} parent=1 // pred_region
      %52 = vsyncadd [#allocation5], 0
      %s54 = sshll.u32 [#allocation6], 4
      %s55 = int_to_ptr.vmem [resolvable:$true] %s54
      %s56 = sshll.u32 %s4, 4
      %s57 = int_to_ptr.hbm [resolvable:$true] %s56
      %59 = dma.vmem_to_hbm [thread:$0]  %s55, 64, %s57, [#allocation5]
    $region25: #{tpu_custom_call.1} parent=1 // pred_fallthru
      _
    // Predicated region
    $region26: #{tpu_custom_call.1} parent=1 // pred_check
      _
    $region27: #{tpu_custom_call.1} parent=1 // pred_check_branch
      %61 = sbr.rel (0) target = $region29
    $region28: #{tpu_custom_call.1} parent=1 // pred_region
      %63 = dma.done [#allocation5], 64
    $region29: #{tpu_custom_call.1} parent=1 // pred_fallthru
      _
    %64 = vsyncpa [#allocation4], 1
    %65 = vsyncpa [#allocation5], 1

</llo_original>
